<compile_context>
chip_gen: v5e
topology: v5e:2x2
jax: 0.10.0
libtpu: 0.0.40
codegen_flags: <defaults>
</compile_context>

<pallas_src>
import functools

import jax
import jax.numpy as jnp
import numpy as np
from jax.experimental import pallas as pl
from jax.experimental.pallas import tpu as pltpu


def _nce_kernel(z_ref, n_ref, a_ref, out_ref, scal_ref, *, tau, momentum, len_neg):
    """One grid step == B_blk independent NCE instances.

    z_ref    : (B_blk, 1, 1) f32  current normalization constant Z (< 0 => unset)
    n_ref    : (B_blk, N, D) f32  normal vectors
    a_ref    : (B_blk, M, D) f32  anormal / negative vectors
    out_ref  : (B_blk, N, W) f32  cols [0,N)   = exp(pos)/Z (diag kept),
                                  cols [N,N+M) = exp(neg)/Z, rest 0
    scal_ref : (B_blk, 1, W) f32  col 0 = updated Z, col 1 = probs
    """
    Bb, N, D = n_ref.shape
    M = a_ref.shape[1]
    K = N + M
    W = out_ref.shape[-1]
    inv_tau = 1.0 / float(tau)

    n = n_ref[...]                                # (Bb, N, D)
    a = a_ref[...]                                # (Bb, M, D)

    # RHS = [n; a; 0] stacked along rows (sublane dim, all pieces 8-aligned) so
    # the matmul / exp / store all run at full 128-lane width: same vreg count
    # as a 24-lane tile, but the final store is one unmasked full-width vst.
    c = jnp.concatenate(
        [n, a, jnp.zeros((Bb, W - K, D), jnp.float32)], axis=1)      # (Bb, W, D)

    # One batched MXU contraction over the feature dim.
    # TODO(synk): when D >= 128, cast n/c to bf16 (keep f32 accumulation) for
    # the 256-wide MXU on v6e/v7x; at D=32 f32 is both cheaper and safer
    # (tau = 0.07 amplifies logit error ~14x before the exp).
    s = jnp.einsum("bnd,bkd->bnk", n, c,
                   preferred_element_type=jnp.float32)               # (Bb, N, W)

    e = jnp.exp(s * inv_tau)                      # single EUP pass for pos+neg
    row = jax.lax.broadcasted_iota(jnp.int32, (Bb, N, W), 1)
    col = jax.lax.broadcasted_iota(jnp.int32, (Bb, N, W), 2)
    is_pos = col < N
    offdiag = is_pos & (col != row)
    e_m = jnp.where(col < K, e, 0.0)              # zero the padded exp(0)=1 lanes

    # Z_new = mean over the virtual (N*(N-1), M+1) exp matrix * len_neg.
    # Single weighted full reduce: off-diag positives weight 1, negatives N-1.
    w = jnp.where(offdiag, 1.0, jnp.where(is_pos, 0.0, float(N - 1)))
    total = jnp.sum(jnp.sum(w * e_m, axis=2, keepdims=True),
                    axis=1, keepdims=True)                            # (Bb,1,1)
    z_new = total * (float(len_neg) / float(N * (N - 1) * (M + 1)))

    # Buffer-update semantics: first call (Z < 0) sets Z, otherwise EMA.
    z_old = z_ref[...]                                                # (Bb,1,1)
    z = jnp.where(z_old < 0.0, z_new,
                  (1.0 - float(momentum)) * z_new + float(momentum) * z_old)

    # probs = mean over off-diag (i,j) of e_pos / (e_pos + row_neg_sum); 1/Z
    # cancels.  EUP approx reciprocal + VPU multiply (probs is a metric only;
    # switch approx=False if it ever feeds a gradient).
    neg_row_sum = jnp.sum(jnp.where(is_pos, 0.0, e_m), axis=2, keepdims=True)
    ratio = jnp.where(offdiag,
                      e_m * pl.reciprocal(e_m + neg_row_sum, approx=True), 0.0)
    probs = jnp.sum(jnp.sum(ratio, axis=2, keepdims=True), axis=1, keepdims=True)
    probs = probs * (1.0 / float(N * (N - 1)))

    inv_z = 1.0 / z                                # exact; tiny (Bb,1,1) divide

    out_ref[...] = e_m * inv_z                     # ONE unmasked full-width store

    scol = jax.lax.broadcasted_iota(jnp.int32, (Bb, 1, W), 2)
    scal_ref[...] = jnp.where(scol == 0, z, jnp.where(scol == 1, probs, 0.0))


def nce_average_forward(n_vec, a_vec, z, len_neg, tau, momentum,
                        return_factored=False):
    """Batched NCEAverage forward (B == 1 reproduces the torch module's forward).

    n_vec : (N, D) or (B, N, D)   normal vectors
    a_vec : (M, D) or (B, M, D)   anormal / negative vectors
    z     : scalar or (B,)        current normalization constant(s); < 0 => unset

    Returns (outs, probs, z_new).  outs is (..., N*(N-1), M+1) matching the
    module, or the factored (pos_offdiag (..., N, N-1), negs (..., N, M)) pair
    when return_factored=True (skips the (N-1)x redundant repeat in HBM).
    """
    single = n_vec.ndim == 2
    if single:
        n_vec, a_vec = n_vec[None], a_vec[None]
    n_vec = jnp.asarray(n_vec, jnp.float32)
    a_vec = jnp.asarray(a_vec, jnp.float32)
    B, N, D = n_vec.shape
    M = a_vec.shape[1]
    K = N + M
    W = ((K + 127) // 128) * 128                  # lane-dense output width

    z = jnp.asarray(z, jnp.float32).reshape(-1)
    if z.shape[0] == 1 and B > 1:
        z = jnp.broadcast_to(z, (B,))

    # >= 2 parallel grid steps when B >= 2 (feeds both v7x TensorCores),
    # <= 8 instances per step.  Single instance -> 1 step (v5e/v6e don't care).
    if B == 1:
        b_blk, steps = 1, 1
    else:
        steps = max(2, -(-B // 8))
        b_blk = -(-B // steps)
        steps = -(-B // b_blk)
    B_pad = steps * b_blk
    if B_pad != B:
        pad = B_pad - B
        n_vec = jnp.concatenate([n_vec, jnp.zeros((pad, N, D), jnp.float32)], 0)
        a_vec = jnp.concatenate([a_vec, jnp.zeros((pad, M, D), jnp.float32)], 0)
        z = jnp.concatenate([z, jnp.ones((pad,), jnp.float32)], 0)
    z_in = z.reshape(B_pad, 1, 1)

    out_main, out_scal = pl.pallas_call(
        functools.partial(_nce_kernel, tau=float(tau), momentum=float(momentum),
                          len_neg=int(len_neg)),
        grid=(steps,),
        in_specs=[
            pl.BlockSpec((b_blk, 1, 1), lambda s: (s, 0, 0)),
            pl.BlockSpec((b_blk, N, D), lambda s: (s, 0, 0)),
            pl.BlockSpec((b_blk, M, D), lambda s: (s, 0, 0)),
        ],
        out_specs=(
            pl.BlockSpec((b_blk, N, W), lambda s: (s, 0, 0)),
            pl.BlockSpec((b_blk, 1, W), lambda s: (s, 0, 0)),
        ),
        out_shape=(
            jax.ShapeDtypeStruct((B_pad, N, W), jnp.float32),   # exp/Z tiles
            jax.ShapeDtypeStruct((B_pad, 1, W), jnp.float32),   # [Z, probs, 0...]
        ),
        # VMEM use here is a few hundred KiB; re-derive block sizes against
        # v7x's 64 MiB (32 MiB scoped default) if N/M/b_blk are ever scaled up.
        compiler_params=pltpu.CompilerParams(
            dimension_semantics=("parallel",)),
    )(z_in, n_vec, a_vec)

    e_nn = out_main[:B, :, :N]                    # (B, N, N) exp(pos)/Z, diag kept
    e_na = out_main[:B, :, N:K]                   # (B, N, M) exp(neg)/Z
    z_new = out_scal[:B, 0, 0]                    # (B,)
    probs = out_scal[:B, 0, 1]                    # (B,)

    # Off-diagonal extraction in the XLA glue (flatten trick: no gather, no
    # in-kernel lane shifts).
    off = (e_nn.reshape(B, N * N)[:, :-1]
           .reshape(B, N - 1, N + 1)[:, :, 1:]
           .reshape(B, N, N - 1))

    if return_factored:
        if single:
            return (off[0], e_na[0]), probs[0], z_new[0]
        return (off, e_na), probs, z_new

    pos_col = off.reshape(B, N * (N - 1), 1)
    neg_block = jnp.repeat(e_na, N - 1, axis=1)               # (B, N*(N-1), M)
    outs = jnp.concatenate([pos_col, neg_block], axis=-1)     # (B, N*(N-1), M+1)

    if single:
        return outs[0], probs[0], z_new[0]
    return outs, probs, z_new


def nce_average_ref(n_vec, a_vec, params, len_neg):
    """Pure-numpy reference mirroring the PyTorch code (single instance)."""
    n_vec = np.asarray(n_vec)
    a_vec = np.asarray(a_vec)
    p = np.asarray(params)
    N = n_vec.shape[0]
    n_scores = n_vec @ n_vec.T
    mask = ~np.eye(N, dtype=bool)
    pos_logits = n_scores[mask].reshape(N, -1).reshape(-1, 1)
    n_a = n_vec @ a_vec.T
    neg_logits = np.tile(n_a, (1, N - 1)).reshape(pos_logits.shape[0], -1)
    logits = np.concatenate([pos_logits, neg_logits], axis=-1)
    outs = np.exp(logits / p[1])
    z_new = outs.mean() * len_neg
    z = z_new if p[0] < 0 else (1 - p[2]) * z_new + p[2] * p[0]
    outs = outs / z
    probs = (outs / outs.sum(axis=1, keepdims=True))[:, 0].mean()
    return outs, probs, z


if __name__ == "__main__":
    # module config (deterministic, in-script)
    feature_dim = 32
    N = 8                 # number of normal vectors per instance
    len_neg = 16          # number of anormal (negative) vectors
    tau = 0.07
    Z_momentum = 0.9
    B = 4                 # batched instances -> 2 parallel grid steps, 2/step
    # TODO(synk): the torch module's host-side print of Z and the in-place
    # params buffer mutation have no kernel equivalent; updated Z is returned.

    key = jax.random.PRNGKey(0)
    kn, ka = jax.random.split(key)
    n_vec = jax.random.normal(kn, (B, N, feature_dim), dtype=jnp.float32)
    a_vec = jax.random.normal(ka, (B, len_neg, feature_dim), dtype=jnp.float32)
    # L2-normalize (standard for NCE features; keeps exp(logit/tau) finite)
    n_vec = n_vec / jnp.linalg.norm(n_vec, axis=-1, keepdims=True)
    a_vec = a_vec / jnp.linalg.norm(a_vec, axis=-1, keepdims=True)

    # instance 0 exercises the "first call" (Z < 0) branch, the rest the EMA.
    z_init = jnp.array([-1.0, 2.5, 3.0, 4.0], dtype=jnp.float32)

    outs, probs, z_new = nce_average_forward(
        n_vec, a_vec, z_init, len_neg, tau, Z_momentum)
    jax.block_until_ready((outs, probs, z_new))

    # verify every instance against the per-instance reference
    for b in range(B):
        params_b = np.array([float(z_init[b]), tau, Z_momentum], np.float32)
        o_ref, p_ref, z_ref = nce_average_ref(n_vec[b], a_vec[b], params_b, len_neg)
        np.testing.assert_allclose(np.asarray(outs[b]), o_ref, rtol=2e-2, atol=1e-6)
        np.testing.assert_allclose(float(probs[b]), p_ref, rtol=2e-2)
        np.testing.assert_allclose(float(z_new[b]), z_ref, rtol=2e-2)

    # single-instance path == the original module's forward
    outs1, probs1, z1 = nce_average_forward(
        n_vec[0], a_vec[0], z_init[0], len_neg, tau, Z_momentum)
    jax.block_until_ready((outs1, probs1, z1))
    params0 = np.array([float(z_init[0]), tau, Z_momentum], np.float32)
    o_ref, p_ref, z_ref = nce_average_ref(n_vec[0], a_vec[0], params0, len_neg)
    np.testing.assert_allclose(np.asarray(outs1), o_ref, rtol=2e-2, atol=1e-6)
    np.testing.assert_allclose(float(probs1), p_ref, rtol=2e-2)
    np.testing.assert_allclose(float(z1), z_ref, rtol=2e-2)

    print("KERNEL_OK")
</pallas_src>

<mosaic_0001>
module attributes {stable_mosaic.version = 11 : i64} {
  func.func @_nce_kernel(%arg0: i32, %arg1: memref<2x1x1xf32, #tpu.memory_space<vmem>>, %arg2: memref<2x8x32xf32, #tpu.memory_space<vmem>>, %arg3: memref<2x16x32xf32, #tpu.memory_space<vmem>>, %arg4: memref<2x8x128xf32, #tpu.memory_space<vmem>>, %arg5: memref<2x1x128xf32, #tpu.memory_space<vmem>>) attributes {dimension_semantics = [#tpu.dimension_semantics<parallel>], iteration_bounds = array<i64: 2>, scalar_prefetch = 0 : i64, scratch_operands = 0 : i64, tpu.core_type = #tpu.core_type<tc>, window_params = [{transform_indices = @transform_0, window_bounds = array<i64: 2, 1, 1>}, {transform_indices = @transform_1, window_bounds = array<i64: 2, 8, 32>}, {transform_indices = @transform_2, window_bounds = array<i64: 2, 16, 32>}, {transform_indices = @transform_3, window_bounds = array<i64: 2, 8, 128>}, {transform_indices = @transform_4, window_bounds = array<i64: 2, 1, 128>}]} {
    %c0 = arith.constant 0 : index
    %c0_0 = arith.constant 0 : index
    %c0_1 = arith.constant 0 : index
    %0 = vector.load %arg2[%c0, %c0_0, %c0_1] : memref<2x8x32xf32, #tpu.memory_space<vmem>>, vector<2x8x32xf32>
    %c0_2 = arith.constant 0 : index
    %c0_3 = arith.constant 0 : index
    %c0_4 = arith.constant 0 : index
    %1 = vector.load %arg3[%c0_2, %c0_3, %c0_4] : memref<2x16x32xf32, #tpu.memory_space<vmem>>, vector<2x16x32xf32>
    %cst = arith.constant 0.000000e+00 : f32
    %2 = vector.broadcast %cst : f32 to vector<2x104x32xf32>
    %3 = tpu.concatenate %0, %1, %2 in 1 : vector<2x8x32xf32>, vector<2x16x32xf32>, vector<2x104x32xf32> -> vector<2x128x32xf32>
    "tpu.trace_start"() <{level = 10 : i32, message = "bnd,bkd->bnk"}> : () -> ()
    %cst_5 = arith.constant dense<0.000000e+00> : vector<2x8x128xf32>
    %4 = tpu.matmul %0, %3, %cst_5 {dimension_numbers = #tpu.dot_dimension_numbers<[2], [2], [1], [1], [0, 0, 0, 1, 1, 1], [0], [0]>} : vector<2x8x32xf32>, vector<2x128x32xf32>, vector<2x8x128xf32> -> vector<2x8x128xf32>
    "tpu.trace_stop"() : () -> ()
    %cst_6 = arith.constant 14.2857141 : f32
    %5 = vector.broadcast %cst_6 : f32 to vector<2x8x128xf32>
    %6 = arith.mulf %4, %5 : vector<2x8x128xf32>
    %7 = math.exp %6 : vector<2x8x128xf32>
    %8 = tpu.iota {dimensions = array<i32: 1>} : vector<2x8x128xi32>
    %9 = tpu.iota {dimensions = array<i32: 2>} : vector<2x8x128xi32>
    %c8_i32 = arith.constant 8 : i32
    %10 = vector.broadcast %c8_i32 : i32 to vector<2x8x128xi32>
    %11 = arith.cmpi slt, %9, %10 : vector<2x8x128xi32>
    %12 = arith.cmpi ne, %9, %8 : vector<2x8x128xi32>
    %13 = arith.andi %11, %12 : vector<2x8x128xi1>
    %c24_i32 = arith.constant 24 : i32
    %14 = vector.broadcast %c24_i32 : i32 to vector<2x8x128xi32>
    %15 = arith.cmpi slt, %9, %14 : vector<2x8x128xi32>
    %cst_7 = arith.constant 0.000000e+00 : f32
    %16 = vector.broadcast %cst_7 : f32 to vector<2x8x128xf32>
    %17 = arith.select %15, %7, %16 : vector<2x8x128xi1>, vector<2x8x128xf32>
    %cst_8 = arith.constant 0.000000e+00 : f32
    %cst_9 = arith.constant 7.000000e+00 : f32
    %18 = vector.broadcast %cst_8 : f32 to vector<2x8x128xf32>
    %19 = vector.broadcast %cst_9 : f32 to vector<2x8x128xf32>
    %20 = arith.select %11, %18, %19 : vector<2x8x128xi1>, vector<2x8x128xf32>
    %cst_10 = arith.constant 1.000000e+00 : f32
    %21 = vector.broadcast %cst_10 : f32 to vector<2x8x128xf32>
    %22 = arith.select %13, %21, %20 : vector<2x8x128xi1>, vector<2x8x128xf32>
    %23 = arith.mulf %22, %17 : vector<2x8x128xf32>
    %cst_11 = arith.constant dense<0.000000e+00> : vector<2x8xf32>
    %24 = vector.multi_reduction <add>, %23, %cst_11 [2] : vector<2x8x128xf32> to vector<2x8xf32>
    %25 = vector.shape_cast %24 : vector<2x8xf32> to vector<2x8x1xf32>
    %cst_12 = arith.constant dense<0.000000e+00> : vector<2x1xf32>
    %26 = vector.multi_reduction <add>, %25, %cst_12 [1] : vector<2x8x1xf32> to vector<2x1xf32>
    %27 = vector.shape_cast %26 : vector<2x1xf32> to vector<2x1x1xf32>
    %cst_13 = arith.constant 0.0168067235 : f32
    %28 = vector.broadcast %cst_13 : f32 to vector<2x1x1xf32>
    %29 = arith.mulf %27, %28 : vector<2x1x1xf32>
    %c0_14 = arith.constant 0 : index
    %c0_15 = arith.constant 0 : index
    %c0_16 = arith.constant 0 : index
    %30 = vector.load %arg1[%c0_14, %c0_15, %c0_16] : memref<2x1x1xf32, #tpu.memory_space<vmem>>, vector<2x1x1xf32>
    %cst_17 = arith.constant 0.000000e+00 : f32
    %31 = vector.broadcast %cst_17 : f32 to vector<2x1x1xf32>
    %32 = arith.cmpf olt, %30, %31 : vector<2x1x1xf32>
    %cst_18 = arith.constant 1.000000e-01 : f32
    %33 = vector.broadcast %cst_18 : f32 to vector<2x1x1xf32>
    %34 = arith.mulf %33, %29 : vector<2x1x1xf32>
    %cst_19 = arith.constant 0.899999976 : f32
    %35 = vector.broadcast %cst_19 : f32 to vector<2x1x1xf32>
    %36 = arith.mulf %35, %30 : vector<2x1x1xf32>
    %37 = arith.addf %34, %36 : vector<2x1x1xf32>
    %38 = arith.select %32, %29, %37 : vector<2x1x1xi1>, vector<2x1x1xf32>
    %cst_20 = arith.constant 0.000000e+00 : f32
    %39 = vector.broadcast %cst_20 : f32 to vector<2x8x128xf32>
    %40 = arith.select %11, %39, %17 : vector<2x8x128xi1>, vector<2x8x128xf32>
    %cst_21 = arith.constant dense<0.000000e+00> : vector<2x8xf32>
    %41 = vector.multi_reduction <add>, %40, %cst_21 [2] : vector<2x8x128xf32> to vector<2x8xf32>
    %42 = vector.shape_cast %41 : vector<2x8xf32> to vector<2x8x1xf32>
    %43 = vector.broadcast %42 : vector<2x8x1xf32> to vector<2x8x128xf32>
    %44 = arith.addf %17, %43 : vector<2x8x128xf32>
    %45 = tpu.reciprocal %44 {approx = true} : vector<2x8x128xf32> -> vector<2x8x128xf32>
    %46 = arith.mulf %17, %45 : vector<2x8x128xf32>
    %cst_22 = arith.constant 0.000000e+00 : f32
    %47 = vector.broadcast %cst_22 : f32 to vector<2x8x128xf32>
    %48 = arith.select %13, %46, %47 : vector<2x8x128xi1>, vector<2x8x128xf32>
    %cst_23 = arith.constant dense<0.000000e+00> : vector<2x8xf32>
    %49 = vector.multi_reduction <add>, %48, %cst_23 [2] : vector<2x8x128xf32> to vector<2x8xf32>
    %50 = vector.shape_cast %49 : vector<2x8xf32> to vector<2x8x1xf32>
    %cst_24 = arith.constant dense<0.000000e+00> : vector<2x1xf32>
    %51 = vector.multi_reduction <add>, %50, %cst_24 [1] : vector<2x8x1xf32> to vector<2x1xf32>
    %52 = vector.shape_cast %51 : vector<2x1xf32> to vector<2x1x1xf32>
    %cst_25 = arith.constant 0.0178571437 : f32
    %53 = vector.broadcast %cst_25 : f32 to vector<2x1x1xf32>
    %54 = arith.mulf %52, %53 : vector<2x1x1xf32>
    %cst_26 = arith.constant 1.000000e+00 : f32
    %55 = vector.broadcast %cst_26 : f32 to vector<2x1x1xf32>
    %56 = arith.divf %55, %38 : vector<2x1x1xf32>
    %57 = vector.broadcast %56 : vector<2x1x1xf32> to vector<2x8x128xf32>
    %58 = arith.mulf %17, %57 : vector<2x8x128xf32>
    %c0_27 = arith.constant 0 : index
    %c0_28 = arith.constant 0 : index
    %c0_29 = arith.constant 0 : index
    %59 = vector.load %arg4[%c0_27, %c0_28, %c0_29] : memref<2x8x128xf32, #tpu.memory_space<vmem>>, vector<2x8x128xf32>
    tpu.vector_store %arg4[%c0_27, %c0_28, %c0_29], %58 {strides = array<i32>} : memref<2x8x128xf32, #tpu.memory_space<vmem>>, vector<2x8x128xf32>,
    %60 = tpu.iota {dimensions = array<i32: 2>} : vector<2x1x128xi32>
    %c0_i32 = arith.constant 0 : i32
    %61 = vector.broadcast %c0_i32 : i32 to vector<2x1x128xi32>
    %62 = arith.cmpi eq, %60, %61 : vector<2x1x128xi32>
    %c1_i32 = arith.constant 1 : i32
    %63 = vector.broadcast %c1_i32 : i32 to vector<2x1x128xi32>
    %64 = arith.cmpi eq, %60, %63 : vector<2x1x128xi32>
    %cst_30 = arith.constant 0.000000e+00 : f32
    %65 = vector.shape_cast %54 : vector<2x1x1xf32> to vector<2x1x1xf32>
    %66 = vector.broadcast %65 : vector<2x1x1xf32> to vector<2x1x128xf32>
    %67 = vector.broadcast %cst_30 : f32 to vector<2x1x128xf32>
    %68 = arith.select %64, %66, %67 : vector<2x1x128xi1>, vector<2x1x128xf32>
    %69 = vector.shape_cast %38 : vector<2x1x1xf32> to vector<2x1x1xf32>
    %70 = vector.broadcast %69 : vector<2x1x1xf32> to vector<2x1x128xf32>
    %71 = arith.select %62, %70, %68 : vector<2x1x128xi1>, vector<2x1x128xf32>
    %c0_31 = arith.constant 0 : index
    %c0_32 = arith.constant 0 : index
    %c0_33 = arith.constant 0 : index
    %72 = vector.load %arg5[%c0_31, %c0_32, %c0_33] : memref<2x1x128xf32, #tpu.memory_space<vmem>>, vector<2x1x128xf32>
    tpu.vector_store %arg5[%c0_31, %c0_32, %c0_33], %71 {strides = array<i32>} : memref<2x1x128xf32, #tpu.memory_space<vmem>>, vector<2x1x128xf32>,
    return
  }
  func.func @transform_0(%arg0: i32) -> (i32, i32, i32) {
    %c0_i32 = arith.constant 0 : i32
    %c0_i32_0 = arith.constant 0 : i32
    %c0_i32_1 = arith.constant 0 : i32
    return %arg0, %c0_i32, %c0_i32_0 : i32, i32, i32
  }
  func.func @transform_1(%arg0: i32) -> (i32, i32, i32) {
    %c0_i32 = arith.constant 0 : i32
    %c0_i32_0 = arith.constant 0 : i32
    %c0_i32_1 = arith.constant 0 : i32
    return %arg0, %c0_i32, %c0_i32_0 : i32, i32, i32
  }
  func.func @transform_2(%arg0: i32) -> (i32, i32, i32) {
    %c0_i32 = arith.constant 0 : i32
    %c0_i32_0 = arith.constant 0 : i32
    %c0_i32_1 = arith.constant 0 : i32
    return %arg0, %c0_i32, %c0_i32_0 : i32, i32, i32
  }
  func.func @transform_3(%arg0: i32) -> (i32, i32, i32) {
    %c0_i32 = arith.constant 0 : i32
    %c0_i32_0 = arith.constant 0 : i32
    %c0_i32_1 = arith.constant 0 : i32
    return %arg0, %c0_i32, %c0_i32_0 : i32, i32, i32
  }
  func.func @transform_4(%arg0: i32) -> (i32, i32, i32) {
    %c0_i32 = arith.constant 0 : i32
    %c0_i32_0 = arith.constant 0 : i32
    %c0_i32_1 = arith.constant 0 : i32
    return %arg0, %c0_i32, %c0_i32_0 : i32, i32, i32
  }
}

</mosaic_0001>

<llo_original>
// kernel: tpu_custom_call.1
$region0: #{tpu_custom_call.1}
  #allocation0 [shape = 'u32[]', space=smem, size = 0x4, offset = 0x4, fixed_abs, tag = 'smem constant byte address 0x4 - core index']
  #allocation1 [shape = 'u32[72,128]{1,0:T(1,128)}', space=vmem, size = 0x9000, scoped, tag = 'internal scratch']
  %s0 = inlined_call_operand.vmem [shape: f32[4,1,1], index: 0, kind: input, shape index: {}]
  %s1 = inlined_call_operand.hbm [shape: f32[4,8,32], index: 1, kind: input, shape index: {}]
  %s2 = inlined_call_operand.hbm [shape: f32[4,16,32], index: 2, kind: input, shape index: {}]
  %s3 = inlined_call_operand.hbm [shape: f32[4,8,128], index: 3, kind: output, shape index: {0}]
  %s4 = inlined_call_operand.hbm [shape: f32[4,1,128], index: 4, kind: output, shape index: {1}]
  %5 = xla_tuple %s3, %s4
  %s6 = sld [smem:[#allocation0]]
  $region61: #{tpu_custom_call.1} parent=0
    _
  %s8 = ssub.s32 1, %s6
  %s9 = scalar_select 0, %s8, %s6
  $region1: #{tpu_custom_call.1} parent=0
    #allocation2 [shape = 'u8[16384]{0}', space=vmem, size = 0x4000, scoped, tag = 'input window, operand 1']
    #allocation3 [shape = 's32[2]{0}', space=sflag, size = 0x8, scoped, tag = 'scoped memory for tpu_custom_call.1']
    #allocation4 [shape = 's32[2]{0}', space=sflag, size = 0x8, scoped, tag = 'scoped memory for tpu_custom_call.1']
    #allocation5 [shape = 'u8[32768]{0}', space=vmem, size = 0x8000, scoped, tag = 'input window, operand 2']
    #allocation6 [shape = 's32[2]{0}', space=sflag, size = 0x8, scoped, tag = 'scoped memory for tpu_custom_call.1']
    #allocation7 [shape = 'u8[16384]{0}', space=vmem, size = 0x4000, scoped, tag = 'output window, operand 0']
    #allocation8 [shape = 'u8[2048]{0}', space=vmem, size = 0x800, scoped, tag = 'output window, operand 1']
    #allocation9 [shape = 's32[2]{0}', space=sflag, size = 0x8, scoped, tag = 'scoped memory for tpu_custom_call.1']
    %10 = vsyncpa [#allocation3], 0
    %s11 = scalar_lea.sflag [#allocation3], 1
    %12 = vsyncpa %s11, 0
    %13 = vsyncpa [#allocation6], 0
    %s14 = scalar_lea.sflag [#allocation6], 1
    %15 = vsyncpa %s14, 0
    %16 = vsyncpa [#allocation4], 0
    %s17 = scalar_lea.sflag [#allocation4], 1
    %18 = vsyncpa %s17, 0
    %19 = vsyncpa [#allocation9], 0
    %s20 = scalar_lea.sflag [#allocation9], 1
    %21 = vsyncpa %s20, 0
    loop: start=0, step=1, limit=4
    $region2: #{tpu_custom_call.1} parent=1 // loop_pre_header
      _
    $region3: #{tpu_custom_call.1} parent=1 // loop_header
      %s23 = sphi 0, %s27
      %p24 = scmp.ge.s32.totalorder %s23, 4
      %s33 = sphi 0, %s35
      %s36 = sphi 0, %s33
      %s37 = sphi 0, %s36
      %s53 = sphi 0, %s37
      %s59 = sphi 0, %s61
      %s62 = sphi 0, %s59
      %s63 = sphi 0, %s62
      %s79 = sphi 0, %s63
      %s85 = sphi 0, %s87
      %s88 = sphi 0, %s85
      %s89 = sphi 0, %s88
      %s105 = sphi 0, %s89
      %s111 = sphi 0, %s113
      %s114 = sphi 0, %s111
      %s115 = sphi 0, %s114
      %s131 = sphi 0, %s115
      %s137 = sphi 0, %s139
      %s140 = sphi 0, %s137
      %s141 = sphi 0, %s140
      %s157 = sphi 0, %s141
    $region4: #{tpu_custom_call.1} parent=1 // loop_header_branch
      %26 = sbr.rel (%p24) target = $region8
    $region5: #{tpu_custom_call.1} parent=1 // loop_body
      %s28 = ssub.s32 %s23, 1
      %s29 = ssub.s32 %s23, 2
      %s30 = sadd.s32 %s23, 1
      %s31 = ssub.s32 %s23, %s30
      %p32 = scmp.eq.s32.totalorder %s31, 0
      %s34 = sadd.s32 %s33, 1
      %s35 = scalar_select %p32, %s33, %s34
      %p38 = pneg %p32
      %p39 = scmp.eq.s32.totalorder %s23, 1
      %p40 = por %p38, %p39
      %p41 = scmp.ne.s32.totalorder %s33, %s36
      %p42 = scmp.eq.s32.totalorder %s23, 0
      %p43 = por %p41, %p42
      %p44 = scmp.ne.s32.totalorder %s33, %s36
      %p45 = scmp.eq.s32.totalorder %s28, 1
      %p46 = por %p44, %p45
      %p47 = scmp.ne.s32.totalorder %s36, %s37
      %p48 = scmp.eq.s32.totalorder %s28, 0
      %p49 = por %p47, %p48
      %p50 = scmp.ne.s32.totalorder %s36, %s37
      %p51 = scmp.eq.s32.totalorder %s29, 1
      %p52 = por %p50, %p51
      %p54 = scmp.ne.s32.totalorder %s37, %s53
      %p55 = scmp.eq.s32.totalorder %s29, 0
      %p56 = por %p54, %p55
      %s57 = ssub.s32 %s23, %s30
      %p58 = scmp.eq.s32.totalorder %s57, 0
      %s60 = sadd.s32 %s59, 1
      %s61 = scalar_select %p58, %s59, %s60
      %p64 = pneg %p58
      %p65 = scmp.eq.s32.totalorder %s23, 1
      %p66 = por %p64, %p65
      %p67 = scmp.ne.s32.totalorder %s59, %s62
      %p68 = scmp.eq.s32.totalorder %s23, 0
      %p69 = por %p67, %p68
      %p70 = scmp.ne.s32.totalorder %s59, %s62
      %p71 = scmp.eq.s32.totalorder %s28, 1
      %p72 = por %p70, %p71
      %p73 = scmp.ne.s32.totalorder %s62, %s63
      %p74 = scmp.eq.s32.totalorder %s28, 0
      %p75 = por %p73, %p74
      %p76 = scmp.ne.s32.totalorder %s62, %s63
      %p77 = scmp.eq.s32.totalorder %s29, 1
      %p78 = por %p76, %p77
      %p80 = scmp.ne.s32.totalorder %s63, %s79
      %p81 = scmp.eq.s32.totalorder %s29, 0
      %p82 = por %p80, %p81
      %s83 = ssub.s32 %s23, %s30
      %p84 = scmp.eq.s32.totalorder %s83, 0
      %s86 = sadd.s32 %s85, 1
      %s87 = scalar_select %p84, %s85, %s86
      %p90 = pneg %p84
      %p91 = scmp.eq.s32.totalorder %s23, 1
      %p92 = por %p90, %p91
      %p93 = scmp.ne.s32.totalorder %s85, %s88
      %p94 = scmp.eq.s32.totalorder %s23, 0
      %p95 = por %p93, %p94
      %p96 = scmp.ne.s32.totalorder %s85, %s88
      %p97 = scmp.eq.s32.totalorder %s28, 1
      %p98 = por %p96, %p97
      %p99 = scmp.ne.s32.totalorder %s88, %s89
      %p100 = scmp.eq.s32.totalorder %s28, 0
      %p101 = por %p99, %p100
      %p102 = scmp.ne.s32.totalorder %s88, %s89
      %p103 = scmp.eq.s32.totalorder %s29, 1
      %p104 = por %p102, %p103
      %p106 = scmp.ne.s32.totalorder %s89, %s105
      %p107 = scmp.eq.s32.totalorder %s29, 0
      %p108 = por %p106, %p107
      %s109 = ssub.s32 %s23, %s30
      %p110 = scmp.eq.s32.totalorder %s109, 0
      %s112 = sadd.s32 %s111, 1
      %s113 = scalar_select %p110, %s111, %s112
      %p116 = pneg %p110
      %p117 = scmp.eq.s32.totalorder %s23, 1
      %p118 = por %p116, %p117
      %p119 = scmp.ne.s32.totalorder %s111, %s114
      %p120 = scmp.eq.s32.totalorder %s23, 0
      %p121 = por %p119, %p120
      %p122 = scmp.ne.s32.totalorder %s111, %s114
      %p123 = scmp.eq.s32.totalorder %s28, 1
      %p124 = por %p122, %p123
      %p125 = scmp.ne.s32.totalorder %s114, %s115
      %p126 = scmp.eq.s32.totalorder %s28, 0
      %p127 = por %p125, %p126
      %p128 = scmp.ne.s32.totalorder %s114, %s115
      %p129 = scmp.eq.s32.totalorder %s29, 1
      %p130 = por %p128, %p129
      %p132 = scmp.ne.s32.totalorder %s115, %s131
      %p133 = scmp.eq.s32.totalorder %s29, 0
      %p134 = por %p132, %p133
      %s135 = ssub.s32 %s23, %s30
      %p136 = scmp.eq.s32.totalorder %s135, 0
      %s138 = sadd.s32 %s137, 1
      %s139 = scalar_select %p136, %s137, %s138
      %p142 = pneg %p136
      %p143 = scmp.eq.s32.totalorder %s23, 1
      %p144 = por %p142, %p143
      %p145 = scmp.ne.s32.totalorder %s137, %s140
      %p146 = scmp.eq.s32.totalorder %s23, 0
      %p147 = por %p145, %p146
      %p148 = scmp.ne.s32.totalorder %s137, %s140
      %p149 = scmp.eq.s32.totalorder %s28, 1
      %p150 = por %p148, %p149
      %p151 = scmp.ne.s32.totalorder %s140, %s141
      %p152 = scmp.eq.s32.totalorder %s28, 0
      %p153 = por %p151, %p152
      %p154 = scmp.ne.s32.totalorder %s140, %s141
      %p155 = scmp.eq.s32.totalorder %s29, 1
      %p156 = por %p154, %p155
      %p158 = scmp.ne.s32.totalorder %s141, %s157
      %p159 = scmp.eq.s32.totalorder %s29, 0
      %p160 = por %p158, %p159
      %p161 = scmp.le.s32.totalorder 1, %s23
      %p162 = scmp.lt.s32.totalorder %s23, 3
      %p163 = pnand %p161, %p162
      %p164 = pneg %p163
      // Predicated region
      $region9: #{tpu_custom_call.1} parent=5 // pred_check
        _
      $region10: #{tpu_custom_call.1} parent=5 // pred_check_branch
        %166 = sbr.rel (%p163) target = $region12
      $region11: #{tpu_custom_call.1} parent=5 // pred_region
        %s167 = ssub.s32 %s23, 1
      $region12: #{tpu_custom_call.1} parent=5 // pred_fallthru
        _
      %p168 = scmp.lt.s32.totalorder %s23, 2
      // Predicated region
      $region13: #{tpu_custom_call.1} parent=5 // pred_check
        %p169 = pneg %p168
      $region14: #{tpu_custom_call.1} parent=5 // pred_check_branch
        %171 = sbr.rel (%p169) target = $region16
      $region15: #{tpu_custom_call.1} parent=5 // pred_region
        // Predicated region
        $region17: #{tpu_custom_call.1} parent=15 // pred_check
          %p172 = pneg %p43
        $region18: #{tpu_custom_call.1} parent=15 // pred_check_branch
          %174 = sbr.rel (%p172) target = $region20
        $region19: #{tpu_custom_call.1} parent=15 // pred_region
          %s175 = smul.u32 2, %s23
          %p176 = scmp.lt.s32.totalorder %s175, 3
          %s177 = scalar_select %p176, %s175, 3
          %s178 = scalar_lea.vmem %s0, %s177
          %s179 = smul.u32 2, %s23
        $region20: #{tpu_custom_call.1} parent=15 // pred_fallthru
          _
        // Predicated region
        $region21: #{tpu_custom_call.1} parent=15 // pred_check
          %p180 = pneg %p69
        $region22: #{tpu_custom_call.1} parent=15 // pred_check_branch
          %182 = sbr.rel (%p180) target = $region24
        $region23: #{tpu_custom_call.1} parent=15 // pred_region
          %s183 = sand.u32 %s59, 1
          %s184 = scalar_lea.sflag [#allocation3], %s183
          %s185 = sand.u32 %s59, 1
          %s186 = smul.addr %s185, 16
          %s187 = scalar_lea.vmem [#allocation2], %s186
          %s188 = smul.u32 2, %s23
          %190 = vsyncadd %s184, 0
          %s191 = smul.addr %s188, 8
          %s192 = scalar_lea.hbm %s1, %s191
          %s193 = sshll.u32 %s192, 4
          %s194 = int_to_ptr.hbm [resolvable:$true] %s193
          %s195 = sshll.u32 %s187, 4
          %s196 = int_to_ptr.vmem [resolvable:$true] %s195
          %201 = dma.hbm_to_vmem [thread:$0]  %s194, 256, %s196, %s184, 128, 128, 8
        $region24: #{tpu_custom_call.1} parent=15 // pred_fallthru
          _
        // Predicated region
        $region25: #{tpu_custom_call.1} parent=15 // pred_check
          %p202 = pneg %p95
        $region26: #{tpu_custom_call.1} parent=15 // pred_check_branch
          %204 = sbr.rel (%p202) target = $region28
        $region27: #{tpu_custom_call.1} parent=15 // pred_region
          %s205 = sand.u32 %s85, 1
          %s206 = scalar_lea.sflag [#allocation6], %s205
          %s207 = sand.u32 %s85, 1
          %s208 = smul.addr %s207, 32
          %s209 = scalar_lea.vmem [#allocation5], %s208
          %s210 = smul.u32 2, %s23
          %212 = vsyncadd %s206, 0
          %s213 = smul.addr %s210, 2
          %s214 = smul.addr %s213, 8
          %s215 = scalar_lea.hbm %s2, %s214
          %s216 = sshll.u32 %s215, 4
          %s217 = int_to_ptr.hbm [resolvable:$true] %s216
          %s218 = sshll.u32 %s209, 4
          %s219 = int_to_ptr.vmem [resolvable:$true] %s218
          %224 = dma.hbm_to_vmem [thread:$0]  %s217, 512, %s219, %s206, 128, 128, 8
        $region28: #{tpu_custom_call.1} parent=15 // pred_fallthru
          _
      $region16: #{tpu_custom_call.1} parent=5 // pred_fallthru
        _
      %p225 = scmp.le.s32.totalorder 1, %s23
      %p226 = scmp.lt.s32.totalorder %s23, 3
      %p227 = pnand %p225, %p226
      %p228 = pneg %p227
      // Predicated region
      $region29: #{tpu_custom_call.1} parent=5 // pred_check
        _
      $region30: #{tpu_custom_call.1} parent=5 // pred_check_branch
        %230 = sbr.rel (%p227) target = $region32
      $region31: #{tpu_custom_call.1} parent=5 // pred_region
        %s231 = ssub.s32 %s23, 1
        %s232 = sand.u32 %s62, 1
        %s233 = scalar_lea.sflag [#allocation3], %s232
        %s234 = sand.u32 %s62, 1
        %s235 = smul.addr %s234, 16
        %s236 = scalar_lea.vmem [#allocation2], %s235
        // Predicated region
        $region33: #{tpu_custom_call.1} parent=31 // pred_check
          %p237 = pneg %p75
        $region34: #{tpu_custom_call.1} parent=31 // pred_check_branch
          %239 = sbr.rel (%p237) target = $region36
        $region35: #{tpu_custom_call.1} parent=31 // pred_region
          %241 = dma.done %s233, 256
        $region36: #{tpu_custom_call.1} parent=31 // pred_fallthru
          _
        %s242 = sand.u32 %s88, 1
        %s243 = scalar_lea.sflag [#allocation6], %s242
        %s244 = sand.u32 %s88, 1
        %s245 = smul.addr %s244, 32
        %s246 = scalar_lea.vmem [#allocation5], %s245
        // Predicated region
        $region37: #{tpu_custom_call.1} parent=31 // pred_check
          %p247 = pneg %p101
        $region38: #{tpu_custom_call.1} parent=31 // pred_check_branch
          %249 = sbr.rel (%p247) target = $region40
        $region39: #{tpu_custom_call.1} parent=31 // pred_region
          %251 = dma.done %s243, 512
        $region40: #{tpu_custom_call.1} parent=31 // pred_fallthru
          _
        %s252 = smul.u32 2, %s28
        %p253 = scmp.lt.s32.totalorder %s252, 3
        %s254 = scalar_select %p253, %s252, 3
        %s255 = scalar_lea.vmem %s0, %s254
        %p256 = pneg %p49
        %p257 = pneg %p46
        %s258 = sand.u32 %s62, 1
        %s259 = scalar_lea.sflag [#allocation3], %s258
        %s260 = sand.u32 %s62, 1
        %s261 = smul.addr %s260, 16
        %s262 = scalar_lea.vmem [#allocation2], %s261
        %p263 = pneg %p75
        %p264 = pneg %p72
        %s265 = sand.u32 %s88, 1
        %s266 = scalar_lea.sflag [#allocation6], %s265
        %s267 = sand.u32 %s88, 1
        %s268 = smul.addr %s267, 32
        %s269 = scalar_lea.vmem [#allocation5], %s268
        %p270 = pneg %p101
        %p271 = pneg %p98
        %p272 = pneg %p127
        %p273 = pneg %p124
        %s274 = sand.u32 %s114, 1
        %s275 = scalar_lea.sflag [#allocation4], %s274
        %s276 = sand.u32 %s114, 1
        %s277 = smul.addr %s276, 16
        %s278 = scalar_lea.vmem [#allocation7], %s277
        %p279 = pneg %p153
        %p280 = pneg %p150
        %s281 = sand.u32 %s140, 1
        %s282 = scalar_lea.sflag [#allocation9], %s281
        %s283 = sand.u32 %s140, 1
        %s284 = smul.addr %s283, 2
        %s285 = scalar_lea.vmem [#allocation8], %s284
        %s286 = smul.u32 2, %s28
        %p287 = scmp.lt.s32.totalorder %s286, 3
        %s288 = scalar_select %p287, %s286, 3
        %s289 = scalar_lea.vmem %s0, %s288
        %s290 = smul.u32 2, %s28
        %s291 = smul.u32 2, %s28
        %s292 = smul.u32 2, %s28
        %s293 = smul.u32 2, %s28
        %s294 = smul.u32 2, %s28
        %v295 = vld [vmem:[%s236] sm:$0xff]
        %v296 = vld [vmem:[%s236 + $0x8] sm:$0xff]
        %v297 = vld [vmem:[%s246] sm:$0xff]
        %v298 = vld [vmem:[%s246 + $0x8] sm:$0xff]
        %v299 = vld [vmem:[%s246 + $0x10] sm:$0xff]
        %v300 = vld [vmem:[%s246 + $0x18] sm:$0xff]
        %vm301 = vcmask 261120
        %v303 = vsel %vm301, %v295, 0
        %v306 = vsel %vm301, %v297, 0
        %v309 = vsel %vm301, %v298, 0
        %v312 = vsel %vm301, 0.0, 0
        %314 = vmatpush.xpose.msra.mxu0 %v312
        %315 = vmatpush.xpose.msra.mxu0 %v312
        %316 = vmatpush.xpose.msra.mxu0 %v312
        %317 = vmatpush.xpose.msra.mxu0 %v312
        %318 = vmatpush.xpose.msra.mxu0 %v312
        %319 = vmatpush.xpose.msra.mxu0 %v312
        %320 = vmatpush.xpose.msra.mxu0 %v312
        %321 = vmatpush.xpose.msra.mxu0 %v312
        %322 = vmatpush.xpose.msra.mxu0 %v312
        %323 = vmatpush.xpose.msra.mxu0 %v312
        %324 = vmatpush.xpose.msra.mxu0 %v312
        %325 = vmatpush.xpose.msra.mxu0 %v312
        %326 = vmatpush.xpose.msra.mxu0 %v312
        %327 = vmatpush.xpose.msra.mxu0 %v309
        %328 = vmatpush.xpose.msra.mxu0 %v306
        %329 = vmatpush.xpose.msra.mxu0 %v303
        %330 = vmatmul.f32.gmra.mxu0 %v303
        %v331 = vpop.f32.mrf.mxu0
        %v332 = vadd.f32 0.0, %v331
        %333 = vdwg.mxu0
        %v335 = vsel %vm301, %v296, 0
        %v338 = vsel %vm301, %v299, 0
        %v341 = vsel %vm301, %v300, 0
        %343 = vmatpush.xpose.msra.mxu0 %v312
        %344 = vmatpush.xpose.msra.mxu0 %v312
        %345 = vmatpush.xpose.msra.mxu0 %v312
        %346 = vmatpush.xpose.msra.mxu0 %v312
        %347 = vmatpush.xpose.msra.mxu0 %v312
        %348 = vmatpush.xpose.msra.mxu0 %v312
        %349 = vmatpush.xpose.msra.mxu0 %v312
        %350 = vmatpush.xpose.msra.mxu0 %v312
        %351 = vmatpush.xpose.msra.mxu0 %v312
        %352 = vmatpush.xpose.msra.mxu0 %v312
        %353 = vmatpush.xpose.msra.mxu0 %v312
        %354 = vmatpush.xpose.msra.mxu0 %v312
        %355 = vmatpush.xpose.msra.mxu0 %v312
        %356 = vmatpush.xpose.msra.mxu0 %v341
        %357 = vmatpush.xpose.msra.mxu0 %v338
        %358 = vmatpush.xpose.msra.mxu0 %v335
        %359 = vmatmul.f32.gmra.mxu0 %v335
        %v360 = vpop.f32.mrf.mxu0
        %v361 = vadd.f32 0.0, %v360
        %362 = vdwg.mxu0
        %v363 = vmul.f32 %v332, 14.285714
        %v364 = vmul.f32 %v361, 14.285714
        %v365 = vmul.f32 %v363, 1.442695
        %v366 = vpow.pop %v365
        %v367 = vmul.f32 %v364, 1.442695
        %v368 = vpow.pop %v367
        %v369 = vlaneseq
        %v370 = vshrl.u32 %v369, 7
        %v371 = vlaneseq
        %v372 = vand.u32 %v371, 127
        %vm373 = vcmp.lt.s32.totalorder %v372, 8
        %vm374 = vcmp.ne.s32.totalorder %v372, %v370
        %vm375 = vmand %vm373, %vm374
        %vm376 = vcmp.lt.s32.totalorder %v372, 24
        %v377 = vsel %vm376, %v366, 0.0
        %v378 = vsel %vm376, %v368, 0.0
        %v379 = vsel %vm373, 0.0, 7.0
        %v380 = vsel %vm375, 1.0, %v379
        %v381 = vmul.f32 %v380, %v377
        %v382 = vmul.f32 %v380, %v378
        %383 = vadd.xlane.f32.xlu0 %v381
        %v384 = vpop.xlane.xlu0 %383
        %385 = vadd.xlane.f32.xlu0 %v382
        %v386 = vpop.xlane.xlu0 %385
        %v387 = vrot.slane %v384, 4
        %v388 = vadd.f32 %v384, %v387
        %v389 = vrot.slane %v388, 2
        %v390 = vadd.f32 %v388, %v389
        %v391 = vrot.slane %v390, 1
        %v392 = vadd.f32 %v390, %v391
        %v393 = vrot.slane %v386, 4
        %v394 = vadd.f32 %v386, %v393
        %v395 = vrot.slane %v394, 2
        %v396 = vadd.f32 %v394, %v395
        %v397 = vrot.slane %v396, 1
        %v398 = vadd.f32 %v396, %v397
        %v399 = vmul.f32 %v392, 0.016806724
        %v400 = vmul.f32 %v398, 0.016806724
        %v401 = vld [vmem:[%s289] sm:$0x1]
        %v402 = vld [vmem:[%s289 + $0x1] sm:$0x1]
        %vm403 = vcmp.lt.f32.partialorder %v401, 0.0
        %vm404 = vcmp.lt.f32.partialorder %v402, 0.0
        %v405 = vmul.f32 %v399, 0.1
        %v406 = vmul.f32 %v400, 0.1
        %v407 = vmul.f32 %v401, 0.9
        %v408 = vmul.f32 %v402, 0.9
        %v409 = vadd.f32 %v405, %v407
        %v410 = vadd.f32 %v406, %v408
        %v411 = vsel %vm403, %v399, %v409
        %v412 = vsel %vm404, %v400, %v410
        %v413 = vsel %vm373, 0.0, %v377
        %v414 = vsel %vm373, 0.0, %v378
        %415 = vadd.xlane.f32.xlu0 %v413
        %v416 = vpop.xlane.xlu0 %415
        %417 = vadd.xlane.f32.xlu0 %v414
        %v418 = vpop.xlane.xlu0 %417
        %v419 = vadd.f32 %v377, %v416
        %v420 = vadd.f32 %v378, %v418
        %v421 = vrcp.pop %v419
        %v422 = vrcp.pop %v420
        %v423 = vmul.f32 %v377, %v421
        %v424 = vmul.f32 %v378, %v422
        %v425 = vsel %vm375, %v423, 0.0
        %v426 = vsel %vm375, %v424, 0.0
        %427 = vadd.xlane.f32.xlu0 %v425
        %v428 = vpop.xlane.xlu0 %427
        %429 = vadd.xlane.f32.xlu0 %v426
        %v430 = vpop.xlane.xlu0 %429
        %v431 = vrot.slane %v428, 4
        %v432 = vadd.f32 %v428, %v431
        %v433 = vrot.slane %v432, 2
        %v434 = vadd.f32 %v432, %v433
        %v435 = vrot.slane %v434, 1
        %v436 = vadd.f32 %v434, %v435
        %v437 = vrot.slane %v430, 4
        %v438 = vadd.f32 %v430, %v437
        %v439 = vrot.slane %v438, 2
        %v440 = vadd.f32 %v438, %v439
        %v441 = vrot.slane %v440, 1
        %v442 = vadd.f32 %v440, %v441
        %v443 = vmul.f32 %v436, 0.017857144
        %v444 = vmul.f32 %v442, 0.017857144
        %v445 = vrcp.pop %v411
        %v446 = vmul.f32 %v411, %v445
        %v447 = vsub.f32 1.0, %v446
        %v448 = vmul.f32 %v445, %v447
        %v449 = vadd.f32 %v445, %v448
        %vm450 = vweird.f32 %v411
        %vm451 = vweird.f32 %v445
        %vm452 = vmor %vm450, %vm451
        %v453 = vsel %vm452, %v445, %v449
        %v454 = vand.u32 2147483647, %v411
        %vm455 = vcmp.eq.f32.partialorder %v454, 8.507059e+37
        %v456 = vand.u32 %v411, 2147483648
        %v457 = vor.u32 1.1754944e-38, %v456
        %v458 = vsel %vm455, %v457, %v453
        %v459 = vmul.f32 1.0, %v458
        %v460 = vrcp.pop %v412
        %v461 = vmul.f32 %v412, %v460
        %v462 = vsub.f32 1.0, %v461
        %v463 = vmul.f32 %v460, %v462
        %v464 = vadd.f32 %v460, %v463
        %vm465 = vweird.f32 %v412
        %vm466 = vweird.f32 %v460
        %vm467 = vmor %vm465, %vm466
        %v468 = vsel %vm467, %v460, %v464
        %v469 = vand.u32 2147483647, %v412
        %vm470 = vcmp.eq.f32.partialorder %v469, 8.507059e+37
        %v471 = vand.u32 %v412, 2147483648
        %v472 = vor.u32 1.1754944e-38, %v471
        %v473 = vsel %vm470, %v472, %v468
        %v474 = vmul.f32 1.0, %v473
        %v477 = vperm.slane %v459, 0
        %v478 = vperm.slane %v474, 0
        %479 = vset.pattern.permute.xlu0 0
        %480 = vperm.xlu0 %479, %v477
        %v481 = vpop.permute.xlu0 %480
        %483 = vset.pattern.permute.xlu0 0
        %484 = vperm.xlu0 %483, %v478
        %v485 = vpop.permute.xlu0 %484
        %v487 = vmul.f32 %v377, %v481
        %v488 = vmul.f32 %v378, %v485
        %489 = vst [vmem:[%s278] sm:$0xff] %v487
        %490 = vst [vmem:[%s278 + $0x8] sm:$0xff] %v488
        %vm491 = vcmp.eq.s32.totalorder %v372, 0
        %vm492 = vcmp.eq.s32.totalorder %v372, 1
        %v493 = vsel %vm492, %v443, 0.0
        %v494 = vsel %vm492, %v444, 0.0
        %496 = vset.pattern.permute.xlu0 0
        %497 = vperm.xlu0 %496, %v411
        %v498 = vpop.permute.xlu0 %497
        %v500 = vperm.slane %v498, 0
        %502 = vset.pattern.permute.xlu0 0
        %503 = vperm.xlu0 %502, %v412
        %v504 = vpop.permute.xlu0 %503
        %v506 = vperm.slane %v504, 0
        %v507 = vsel %vm491, %v500, %v493
        %v508 = vsel %vm491, %v506, %v494
        %509 = vst [vmem:[%s285] sm:$0x1] %v507
        %510 = vst [vmem:[%s285 + $0x1] sm:$0x1] %v508
        %s511 = sand.u32 %s114, 1
        %s512 = scalar_lea.sflag [#allocation4], %s511
        %s513 = sand.u32 %s114, 1
        %s514 = smul.addr %s513, 16
        %s515 = scalar_lea.vmem [#allocation7], %s514
        %s516 = sand.u32 %s140, 1
        %s517 = scalar_lea.sflag [#allocation9], %s516
        %s518 = sand.u32 %s140, 1
        %s519 = smul.addr %s518, 2
        %s520 = scalar_lea.vmem [#allocation8], %s519
        // Predicated region
        $region41: #{tpu_custom_call.1} parent=31 // pred_check
          %p521 = pneg %p124
        $region42: #{tpu_custom_call.1} parent=31 // pred_check_branch
          %523 = sbr.rel (%p521) target = $region44
        $region43: #{tpu_custom_call.1} parent=31 // pred_region
          %s524 = smul.u32 2, %s28
          %526 = vsyncadd %s512, 0
          %s527 = smul.addr %s524, 8
          %s528 = scalar_lea.hbm %s3, %s527
          %s529 = sshll.u32 %s515, 4
          %s530 = int_to_ptr.vmem [resolvable:$true] %s529
          %s531 = sshll.u32 %s528, 4
          %s532 = int_to_ptr.hbm [resolvable:$true] %s531
          %537 = dma.vmem_to_hbm [thread:$0]  %s530, 256, %s532, %s512, 128, 128, 8
        $region44: #{tpu_custom_call.1} parent=31 // pred_fallthru
          _
        // Predicated region
        $region45: #{tpu_custom_call.1} parent=31 // pred_check
          %p538 = pneg %p150
        $region46: #{tpu_custom_call.1} parent=31 // pred_check_branch
          %540 = sbr.rel (%p538) target = $region48
        $region47: #{tpu_custom_call.1} parent=31 // pred_region
          %s541 = smul.u32 2, %s28
          %543 = vsyncadd %s517, 0
          %s544 = scalar_lea.hbm %s4, %s541
          %s545 = sshll.u32 %s520, 4
          %s546 = int_to_ptr.vmem [resolvable:$true] %s545
          %s547 = sshll.u32 %s544, 4
          %s548 = int_to_ptr.hbm [resolvable:$true] %s547
          %553 = dma.vmem_to_hbm [thread:$0]  %s546, 32, %s548, %s517, 16, 16, 1
        $region48: #{tpu_custom_call.1} parent=31 // pred_fallthru
          _
      $region32: #{tpu_custom_call.1} parent=5 // pred_fallthru
        _
      %p554 = scmp.le.s32.totalorder 2, %s23
      // Predicated region
      $region49: #{tpu_custom_call.1} parent=5 // pred_check
        %p555 = pneg %p554
      $region50: #{tpu_custom_call.1} parent=5 // pred_check_branch
        %557 = sbr.rel (%p555) target = $region52
      $region51: #{tpu_custom_call.1} parent=5 // pred_region
        %s558 = ssub.s32 %s23, 2
        // Predicated region
        $region53: #{tpu_custom_call.1} parent=51 // pred_check
          %p559 = pneg %p130
        $region54: #{tpu_custom_call.1} parent=51 // pred_check_branch
          %561 = sbr.rel (%p559) target = $region56
        $region55: #{tpu_custom_call.1} parent=51 // pred_region
          %s562 = sand.u32 %s115, 1
          %s563 = scalar_lea.sflag [#allocation4], %s562
          %s564 = sand.u32 %s115, 1
          %s565 = smul.addr %s564, 16
          %s566 = scalar_lea.vmem [#allocation7], %s565
          %568 = dma.done %s563, 256
        $region56: #{tpu_custom_call.1} parent=51 // pred_fallthru
          _
        // Predicated region
        $region57: #{tpu_custom_call.1} parent=51 // pred_check
          %p569 = pneg %p156
        $region58: #{tpu_custom_call.1} parent=51 // pred_check_branch
          %571 = sbr.rel (%p569) target = $region60
        $region59: #{tpu_custom_call.1} parent=51 // pred_region
          %s572 = sand.u32 %s141, 1
          %s573 = scalar_lea.sflag [#allocation9], %s572
          %s574 = sand.u32 %s141, 1
          %s575 = smul.addr %s574, 2
          %s576 = scalar_lea.vmem [#allocation8], %s575
          %578 = dma.done %s573, 32
        $region60: #{tpu_custom_call.1} parent=51 // pred_fallthru
          _
      $region52: #{tpu_custom_call.1} parent=5 // pred_fallthru
        _
    $region6: #{tpu_custom_call.1} parent=1 // loop_footer
      %s27 = sadd.s32 1, %s23
    $region7: #{tpu_custom_call.1} parent=1 // loop_footer_branch
      %22 = sbr.rel target = $region3
    $region8: #{tpu_custom_call.1} parent=1 // loop_exit
      _
    %579 = vsyncpa [#allocation3], 1
    %s580 = scalar_lea.sflag [#allocation3], 1
    %581 = vsyncpa %s580, 1
    %582 = vsyncpa [#allocation6], 1
    %s583 = scalar_lea.sflag [#allocation6], 1
    %584 = vsyncpa %s583, 1
    %585 = vsyncpa [#allocation4], 1
    %s586 = scalar_lea.sflag [#allocation4], 1
    %587 = vsyncpa %s586, 1
    %588 = vsyncpa [#allocation9], 1
    %s589 = scalar_lea.sflag [#allocation9], 1
    %590 = vsyncpa %s589, 1

</llo_original>
